<compile_context>
chip_gen: v7x
topology: tpu7x:2x2x1
jax: 0.10.0
libtpu: 0.0.40
codegen_flags: <defaults>
</compile_context>

<pallas_src>
import math

import jax
import jax.numpy as jnp
from jax.experimental import pallas as pl
from jax.experimental.pallas import tpu as pltpu

TB_MAX_DEFAULT = 8192   # per-tile row cap (multiple of 16 for bf16 sublane packing)


def _round_up(v, m):
    return ((v + m - 1) // m) * m


def _actor_kernel(max_action):
    # NOTE: max_action is baked in as a closure constant; a new value triggers a
    # retrace/recompile (fine for a fixed env; use an SMEM scalar if it varies).
    def kernel(x_ref, w1_ref, b1_ref, w2_ref, b2_ref, w3_ref, b3_ref, out_ref):
        # In-kernel bf16 cast of the activation tile (cheap VPU op on (TB, S)).
        x = x_ref[...].astype(jnp.bfloat16)

        # Layer 1: bf16 MXU matmul, f32 accumulate; epilogue stays f32.
        h1 = jnp.dot(x, w1_ref[...], preferred_element_type=jnp.float32)
        h1 = jnp.maximum(h1 + b1_ref[...], 0.0)          # (TB, U1) + (1, U1)

        # Layer 2.
        h2 = jnp.dot(h1.astype(jnp.bfloat16), w2_ref[...],
                     preferred_element_type=jnp.float32)
        h2 = jnp.maximum(h2 + b2_ref[...], 0.0)

        # Layer 3: narrow output (A lanes) — masked stores, no 128-wide padding.
        h3 = jnp.dot(h2.astype(jnp.bfloat16), w3_ref[...],
                     preferred_element_type=jnp.float32)
        h3 = h3 + b3_ref[...]

        # tanh on the EUP; scale on the VPU; store the true (TB, A) block.
        out_ref[...] = (max_action * jnp.tanh(h3)).astype(out_ref.dtype)

    return kernel


def prepare_actor_params(params):
    """One-time prep: cast weights to bf16 for the MXU (biases stay f32).

    Call this once at init / after each optimizer step, NOT per forward, so
    actor_forward issues no per-call cast/pad ops.
    """
    return {
        "w1": params["w1"].astype(jnp.bfloat16),
        "w2": params["w2"].astype(jnp.bfloat16),
        "w3": params["w3"].astype(jnp.bfloat16),
        "b1": params["b1"].astype(jnp.float32),
        "b2": params["b2"].astype(jnp.float32),
        "b3": params["b3"].astype(jnp.float32),
    }


def _choose_tb(batch, cap):
    """Pick the batch tile: >=2 balanced tiles when possible (v7x megacore),
    capped so large batches run a handful of big tiles (v5e/v6e overhead)."""
    b16 = _round_up(max(int(batch), 1), 16)
    tb = _round_up(pl.cdiv(b16, 2), 16)      # two balanced tiles
    tb = max(16, min(tb, int(cap)))
    return tb


def actor_forward(x, params, max_action, *, batch_tile=TB_MAX_DEFAULT):
    """Fused Actor MLP forward pass as one batch-tiled Pallas call.

    x:       (B, state_dim) float32
    params:  dict with w1 (S,U1), b1 (1,U1), w2 (U1,U2), b2 (1,U2),
                        w3 (U2,A),  b3 (1,A)
             (ideally pre-processed once via prepare_actor_params)
    returns: (B, A) float32 action in [-max_action, max_action]
    """
    # Fallback cast for raw f32 params (prefer hoisting via prepare_actor_params).
    if params["w1"].dtype != jnp.bfloat16:
        params = prepare_actor_params(params)

    w1, b1 = params["w1"], params["b1"]
    w2, b2 = params["w2"], params["b2"]
    w3, b3 = params["w3"], params["b3"]

    B, S = x.shape
    U1 = w1.shape[1]
    U2 = w2.shape[1]
    A = w3.shape[1]

    # --- batch tiling --------------------------------------------------------
    TB = _choose_tb(B, batch_tile)
    B_pad = _round_up(B, TB)
    if B_pad != B:
        xp = jnp.zeros((B_pad, S), x.dtype).at[:B].set(x)
    else:
        xp = x
    n_tiles = B_pad // TB

    # Weights/biases: index_map pinned to block 0 -> fetched once, VMEM-resident.
    resident = lambda shape: pl.BlockSpec(shape, lambda i: (0, 0))

    # Advisory cost estimate so XLA schedules this call well inside a jit.
    flops = 2 * B_pad * (S * U1 + U1 * U2 + U2 * A)
    transcendentals = B_pad * A  # tanh
    bytes_accessed = (
        xp.size * xp.dtype.itemsize
        + sum(p.size * p.dtype.itemsize for p in (w1, b1, w2, b2, w3, b3))
        + B_pad * A * 4
    )

    out = pl.pallas_call(
        _actor_kernel(float(max_action)),
        out_shape=jax.ShapeDtypeStruct((B_pad, A), jnp.float32),
        grid=(n_tiles,),
        in_specs=[
            pl.BlockSpec((TB, S), lambda i: (i, 0)),   # activations: tiled on batch
            resident((S, U1)), resident((1, U1)),
            resident((U1, U2)), resident((1, U2)),
            resident((U2, A)), resident((1, A)),
        ],
        out_specs=pl.BlockSpec((TB, A), lambda i: (i, 0)),
        compiler_params=pltpu.CompilerParams(
            dimension_semantics=("parallel",),          # megacore sharding on v7x
        ),
        cost_estimate=pl.CostEstimate(
            flops=int(flops),
            transcendentals=int(transcendentals),
            bytes_accessed=int(bytes_accessed),
        ),
    )(xp, w1, b1, w2, b2, w3, b3)

    # Drop batch padding (no action-dim padding anymore).
    return out[:B] if B_pad != B else out


def init_actor_params(key, state_dim, action_dim, units=(256, 256)):
    """Deterministic init mimicking nn.Linear's default U(-1/sqrt(fan_in), +...)."""
    dims = [state_dim, units[0], units[1], action_dim]
    params = {}
    keys = jax.random.split(key, 6)
    for i in range(3):
        fan_in, fan_out = dims[i], dims[i + 1]
        bound = 1.0 / math.sqrt(fan_in)
        w = jax.random.uniform(keys[2 * i], (fan_in, fan_out),
                               minval=-bound, maxval=bound, dtype=jnp.float32)
        b = jax.random.uniform(keys[2 * i + 1], (1, fan_out),
                               minval=-bound, maxval=bound, dtype=jnp.float32)
        params[f"w{i + 1}"] = w
        params[f"b{i + 1}"] = b
    return params


def actor_reference(x, params, max_action):
    """Pure-JAX f32 reference of the PyTorch forward for correctness checking."""
    h = jnp.maximum(x @ params["w1"] + params["b1"], 0.0)
    h = jnp.maximum(h @ params["w2"] + params["b2"], 0.0)
    h = h @ params["w3"] + params["b3"]
    return max_action * jnp.tanh(h)


if __name__ == "__main__":
    key = jax.random.PRNGKey(0)
    k_params, k_x = jax.random.split(key)

    # Small shapes consistent with the module defaults (units=[256, 256]);
    # batch=100 -> TB=64, 2 balanced grid tiles, exercises batch padding.
    batch = 100
    state_dim = 16
    action_dim = 4
    units = (256, 256)
    max_action = 2.0

    params_f32 = init_actor_params(k_params, state_dim, action_dim, units)
    params = prepare_actor_params(params_f32)        # hoisted one-time bf16 cast
    x = jax.random.normal(k_x, (batch, state_dim), dtype=jnp.float32)

    out = actor_forward(x, params, max_action)
    out = jax.block_until_ready(out)

    ref = actor_reference(x, params_f32, max_action)
    assert out.shape == (batch, action_dim), out.shape
    # bf16 matmul operands (f32 accumulation) -> slightly looser tolerance.
    assert jnp.allclose(out, ref, atol=2.5e-2, rtol=2.5e-2), (
        "mismatch vs reference: max abs err = "
        f"{float(jnp.max(jnp.abs(out - ref)))}")
    assert jnp.all(jnp.abs(out) <= max_action + 1e-5)

    print("KERNEL_OK")
</pallas_src>

<mosaic_0001>
module attributes {stable_mosaic.version = 11 : i64} {
  func.func @kernel(%arg0: i32, %arg1: memref<64x16xf32, #tpu.memory_space<vmem>>, %arg2: memref<16x256xbf16, #tpu.memory_space<vmem>>, %arg3: memref<1x256xf32, #tpu.memory_space<vmem>>, %arg4: memref<256x256xbf16, #tpu.memory_space<vmem>>, %arg5: memref<1x256xf32, #tpu.memory_space<vmem>>, %arg6: memref<256x4xbf16, #tpu.memory_space<vmem>>, %arg7: memref<1x4xf32, #tpu.memory_space<vmem>>, %arg8: memref<64x4xf32, #tpu.memory_space<vmem>>) attributes {dimension_semantics = [#tpu.dimension_semantics<parallel>], iteration_bounds = array<i64: 2>, scalar_prefetch = 0 : i64, scratch_operands = 0 : i64, tpu.core_type = #tpu.core_type<tc>, window_params = [{transform_indices = @transform_0, window_bounds = array<i64: 64, 16>}, {pipeline_mode = #tpu.pipeline_mode<synchronous>, transform_indices = @transform_1, window_bounds = array<i64: 16, 256>}, {pipeline_mode = #tpu.pipeline_mode<synchronous>, transform_indices = @transform_2, window_bounds = array<i64: 1, 256>}, {pipeline_mode = #tpu.pipeline_mode<synchronous>, transform_indices = @transform_3, window_bounds = array<i64: 256, 256>}, {pipeline_mode = #tpu.pipeline_mode<synchronous>, transform_indices = @transform_4, window_bounds = array<i64: 1, 256>}, {pipeline_mode = #tpu.pipeline_mode<synchronous>, transform_indices = @transform_5, window_bounds = array<i64: 256, 4>}, {pipeline_mode = #tpu.pipeline_mode<synchronous>, transform_indices = @transform_6, window_bounds = array<i64: 1, 4>}, {transform_indices = @transform_7, window_bounds = array<i64: 64, 4>}]} {
    %c0 = arith.constant 0 : index
    %c0_0 = arith.constant 0 : index
    %0 = vector.load %arg1[%c0, %c0_0] : memref<64x16xf32, #tpu.memory_space<vmem>>, vector<64x16xf32>
    %1 = arith.truncf %0 : vector<64x16xf32> to vector<64x16xbf16>
    %c0_1 = arith.constant 0 : index
    %c0_2 = arith.constant 0 : index
    %2 = vector.load %arg2[%c0_1, %c0_2] : memref<16x256xbf16, #tpu.memory_space<vmem>>, vector<16x256xbf16>
    %cst = arith.constant dense<0.000000e+00> : vector<64x256xf32>
    %3 = tpu.matmul %1, %2, %cst {dimension_numbers = #tpu.dot_dimension_numbers<[1], [0], [0], [1], [0, 0, 1, 1], [], []>} : vector<64x16xbf16>, vector<16x256xbf16>, vector<64x256xf32> -> vector<64x256xf32>
    %c0_3 = arith.constant 0 : index
    %c0_4 = arith.constant 0 : index
    %4 = vector.load %arg3[%c0_3, %c0_4] : memref<1x256xf32, #tpu.memory_space<vmem>>, vector<1x256xf32>
    %5 = vector.broadcast %4 : vector<1x256xf32> to vector<64x256xf32>
    %6 = arith.addf %3, %5 : vector<64x256xf32>
    %cst_5 = arith.constant 0.000000e+00 : f32
    %7 = vector.broadcast %cst_5 : f32 to vector<64x256xf32>
    %8 = arith.maximumf %6, %7 : vector<64x256xf32>
    %9 = arith.truncf %8 : vector<64x256xf32> to vector<64x256xbf16>
    %c0_6 = arith.constant 0 : index
    %c0_7 = arith.constant 0 : index
    %10 = vector.load %arg4[%c0_6, %c0_7] : memref<256x256xbf16, #tpu.memory_space<vmem>>, vector<256x256xbf16>
    %cst_8 = arith.constant dense<0.000000e+00> : vector<64x256xf32>
    %11 = tpu.matmul %9, %10, %cst_8 {dimension_numbers = #tpu.dot_dimension_numbers<[1], [0], [0], [1], [0, 0, 1, 1], [], []>} : vector<64x256xbf16>, vector<256x256xbf16>, vector<64x256xf32> -> vector<64x256xf32>
    %c0_9 = arith.constant 0 : index
    %c0_10 = arith.constant 0 : index
    %12 = vector.load %arg5[%c0_9, %c0_10] : memref<1x256xf32, #tpu.memory_space<vmem>>, vector<1x256xf32>
    %13 = vector.broadcast %12 : vector<1x256xf32> to vector<64x256xf32>
    %14 = arith.addf %11, %13 : vector<64x256xf32>
    %cst_11 = arith.constant 0.000000e+00 : f32
    %15 = vector.broadcast %cst_11 : f32 to vector<64x256xf32>
    %16 = arith.maximumf %14, %15 : vector<64x256xf32>
    %17 = arith.truncf %16 : vector<64x256xf32> to vector<64x256xbf16>
    %c0_12 = arith.constant 0 : index
    %c0_13 = arith.constant 0 : index
    %18 = vector.load %arg6[%c0_12, %c0_13] : memref<256x4xbf16, #tpu.memory_space<vmem>>, vector<256x4xbf16>
    %cst_14 = arith.constant dense<0.000000e+00> : vector<64x4xf32>
    %19 = tpu.matmul %17, %18, %cst_14 {dimension_numbers = #tpu.dot_dimension_numbers<[1], [0], [0], [1], [0, 0, 1, 1], [], []>} : vector<64x256xbf16>, vector<256x4xbf16>, vector<64x4xf32> -> vector<64x4xf32>
    %c0_15 = arith.constant 0 : index
    %c0_16 = arith.constant 0 : index
    %20 = vector.load %arg7[%c0_15, %c0_16] : memref<1x4xf32, #tpu.memory_space<vmem>>, vector<1x4xf32>
    %21 = vector.broadcast %20 : vector<1x4xf32> to vector<64x4xf32>
    %22 = arith.addf %19, %21 : vector<64x4xf32>
    %23 = math.tanh %22 : vector<64x4xf32>
    %cst_17 = arith.constant 2.000000e+00 : f32
    %24 = vector.broadcast %cst_17 : f32 to vector<64x4xf32>
    %25 = arith.mulf %24, %23 : vector<64x4xf32>
    %c0_18 = arith.constant 0 : index
    %c0_19 = arith.constant 0 : index
    %26 = vector.load %arg8[%c0_18, %c0_19] : memref<64x4xf32, #tpu.memory_space<vmem>>, vector<64x4xf32>
    tpu.vector_store %arg8[%c0_18, %c0_19], %25 {strides = array<i32>} : memref<64x4xf32, #tpu.memory_space<vmem>>, vector<64x4xf32>,
    return
  }
  func.func @transform_0(%arg0: i32) -> (i32, i32) {
    %c0_i32 = arith.constant 0 : i32
    %c0_i32_0 = arith.constant 0 : i32
    return %arg0, %c0_i32 : i32, i32
  }
  func.func @transform_1(%arg0: i32) -> (i32, i32) {
    %c0_i32 = arith.constant 0 : i32
    %c0_i32_0 = arith.constant 0 : i32
    %c0_i32_1 = arith.constant 0 : i32
    return %c0_i32, %c0_i32_0 : i32, i32
  }
  func.func @transform_2(%arg0: i32) -> (i32, i32) {
    %c0_i32 = arith.constant 0 : i32
    %c0_i32_0 = arith.constant 0 : i32
    %c0_i32_1 = arith.constant 0 : i32
    return %c0_i32, %c0_i32_0 : i32, i32
  }
  func.func @transform_3(%arg0: i32) -> (i32, i32) {
    %c0_i32 = arith.constant 0 : i32
    %c0_i32_0 = arith.constant 0 : i32
    %c0_i32_1 = arith.constant 0 : i32
    return %c0_i32, %c0_i32_0 : i32, i32
  }
  func.func @transform_4(%arg0: i32) -> (i32, i32) {
    %c0_i32 = arith.constant 0 : i32
    %c0_i32_0 = arith.constant 0 : i32
    %c0_i32_1 = arith.constant 0 : i32
    return %c0_i32, %c0_i32_0 : i32, i32
  }
  func.func @transform_5(%arg0: i32) -> (i32, i32) {
    %c0_i32 = arith.constant 0 : i32
    %c0_i32_0 = arith.constant 0 : i32
    %c0_i32_1 = arith.constant 0 : i32
    return %c0_i32, %c0_i32_0 : i32, i32
  }
  func.func @transform_6(%arg0: i32) -> (i32, i32) {
    %c0_i32 = arith.constant 0 : i32
    %c0_i32_0 = arith.constant 0 : i32
    %c0_i32_1 = arith.constant 0 : i32
    return %c0_i32, %c0_i32_0 : i32, i32
  }
  func.func @transform_7(%arg0: i32) -> (i32, i32) {
    %c0_i32 = arith.constant 0 : i32
    %c0_i32_0 = arith.constant 0 : i32
    return %arg0, %c0_i32 : i32, i32
  }
}

</mosaic_0001>

<llo_original>
// kernel: tpu_custom_call.1
$region0: #{tpu_custom_call.1}
  #allocation0 [shape = 'u32[]', space=smem, size = 0x4, offset = 0x4, fixed_abs, tag = 'smem constant byte address 0x4 - core index']
  #allocation1 [shape = 'u32[144,128]{1,0:T(1,128)}', space=vmem, size = 0x12000, scoped, tag = 'internal scratch']
  %s0 = inlined_call_operand.vmem [shape: f32[128,16], index: 0, kind: input, shape index: {}]
  %s1 = inlined_call_operand.vmem [shape: bf16[16,256], index: 1, kind: input, shape index: {}]
  %s2 = inlined_call_operand.vmem [shape: f32[1,256], index: 2, kind: input, shape index: {}]
  %s3 = inlined_call_operand.vmem [shape: bf16[256,256], index: 3, kind: input, shape index: {}]
  %s4 = inlined_call_operand.vmem [shape: f32[1,256], index: 4, kind: input, shape index: {}]
  %s5 = inlined_call_operand.vmem [shape: bf16[256,4], index: 5, kind: input, shape index: {}]
  %s6 = inlined_call_operand.vmem [shape: f32[1,4], index: 6, kind: input, shape index: {}]
  %s7 = inlined_call_operand.vmem [shape: f32[128,4], index: 7, kind: output, shape index: {}]
  %s8 = sld [smem:[#allocation0]]
  $region61: #{tpu_custom_call.1} parent=0
    _
  %s10 = ssub.s32 1, %s8
  %s11 = scalar_select 0, %s10, %s8
  loop: start=0, step=1, limit=4
  $region2: #{tpu_custom_call.1} parent=0 // loop_pre_header
    _
  $region3: #{tpu_custom_call.1} parent=0 // loop_header
    %s13 = sphi 0, %s17
    %p14 = scmp.ge.s32.totalorder %s13, 4
    %s23 = sphi 0, %s25
    %s26 = sphi 0, %s23
    %s27 = sphi 0, %s26
    %s43 = sphi 0, %s27
    %s47 = sphi 0, %s47
    %s49 = sphi 0, %s47
    %s50 = sphi 0, %s49
    %s64 = sphi 0, %s50
    %s68 = sphi 0, %s68
    %s70 = sphi 0, %s68
    %s71 = sphi 0, %s70
    %s85 = sphi 0, %s71
    %s89 = sphi 0, %s89
    %s91 = sphi 0, %s89
    %s92 = sphi 0, %s91
    %s106 = sphi 0, %s92
    %s110 = sphi 0, %s110
    %s112 = sphi 0, %s110
    %s113 = sphi 0, %s112
    %s127 = sphi 0, %s113
    %s131 = sphi 0, %s131
    %s133 = sphi 0, %s131
    %s134 = sphi 0, %s133
    %s148 = sphi 0, %s134
    %s152 = sphi 0, %s152
    %s154 = sphi 0, %s152
    %s155 = sphi 0, %s154
    %s169 = sphi 0, %s155
    %s175 = sphi 0, %s177
    %s178 = sphi 0, %s175
    %s179 = sphi 0, %s178
    %s195 = sphi 0, %s179
  $region4: #{tpu_custom_call.1} parent=0 // loop_header_branch
    %16 = sbr.rel (%p14) target = $region8
  $region5: #{tpu_custom_call.1} parent=0 // loop_body
    %s18 = ssub.s32 %s13, 1
    %s19 = ssub.s32 %s13, 2
    %s20 = sadd.s32 %s13, 1
    %s21 = ssub.s32 %s13, %s20
    %p22 = scmp.eq.s32.totalorder %s21, 0
    %s24 = sadd.s32 %s23, 1
    %s25 = scalar_select %p22, %s23, %s24
    %p28 = pneg %p22
    %p29 = scmp.eq.s32.totalorder %s13, 1
    %p30 = por %p28, %p29
    %p31 = scmp.ne.s32.totalorder %s23, %s26
    %p32 = scmp.eq.s32.totalorder %s13, 0
    %p33 = por %p31, %p32
    %p34 = scmp.ne.s32.totalorder %s23, %s26
    %p35 = scmp.eq.s32.totalorder %s18, 1
    %p36 = por %p34, %p35
    %p37 = scmp.ne.s32.totalorder %s26, %s27
    %p38 = scmp.eq.s32.totalorder %s18, 0
    %p39 = por %p37, %p38
    %p40 = scmp.ne.s32.totalorder %s26, %s27
    %p41 = scmp.eq.s32.totalorder %s19, 1
    %p42 = por %p40, %p41
    %p44 = scmp.ne.s32.totalorder %s27, %s43
    %p45 = scmp.eq.s32.totalorder %s19, 0
    %p46 = por %p44, %p45
    %s48 = sadd.s32 %s47, 1
    %p51 = scmp.eq.s32.totalorder %s13, 1
    %p52 = scmp.ne.s32.totalorder %s47, %s49
    %p53 = scmp.eq.s32.totalorder %s13, 0
    %p54 = por %p52, %p53
    %p55 = scmp.ne.s32.totalorder %s47, %s49
    %p56 = scmp.eq.s32.totalorder %s18, 1
    %p57 = por %p55, %p56
    %p58 = scmp.ne.s32.totalorder %s49, %s50
    %p59 = scmp.eq.s32.totalorder %s18, 0
    %p60 = por %p58, %p59
    %p61 = scmp.ne.s32.totalorder %s49, %s50
    %p62 = scmp.eq.s32.totalorder %s19, 1
    %p63 = por %p61, %p62
    %p65 = scmp.ne.s32.totalorder %s50, %s64
    %p66 = scmp.eq.s32.totalorder %s19, 0
    %p67 = por %p65, %p66
    %s69 = sadd.s32 %s68, 1
    %p72 = scmp.eq.s32.totalorder %s13, 1
    %p73 = scmp.ne.s32.totalorder %s68, %s70
    %p74 = scmp.eq.s32.totalorder %s13, 0
    %p75 = por %p73, %p74
    %p76 = scmp.ne.s32.totalorder %s68, %s70
    %p77 = scmp.eq.s32.totalorder %s18, 1
    %p78 = por %p76, %p77
    %p79 = scmp.ne.s32.totalorder %s70, %s71
    %p80 = scmp.eq.s32.totalorder %s18, 0
    %p81 = por %p79, %p80
    %p82 = scmp.ne.s32.totalorder %s70, %s71
    %p83 = scmp.eq.s32.totalorder %s19, 1
    %p84 = por %p82, %p83
    %p86 = scmp.ne.s32.totalorder %s71, %s85
    %p87 = scmp.eq.s32.totalorder %s19, 0
    %p88 = por %p86, %p87
    %s90 = sadd.s32 %s89, 1
    %p93 = scmp.eq.s32.totalorder %s13, 1
    %p94 = scmp.ne.s32.totalorder %s89, %s91
    %p95 = scmp.eq.s32.totalorder %s13, 0
    %p96 = por %p94, %p95
    %p97 = scmp.ne.s32.totalorder %s89, %s91
    %p98 = scmp.eq.s32.totalorder %s18, 1
    %p99 = por %p97, %p98
    %p100 = scmp.ne.s32.totalorder %s91, %s92
    %p101 = scmp.eq.s32.totalorder %s18, 0
    %p102 = por %p100, %p101
    %p103 = scmp.ne.s32.totalorder %s91, %s92
    %p104 = scmp.eq.s32.totalorder %s19, 1
    %p105 = por %p103, %p104
    %p107 = scmp.ne.s32.totalorder %s92, %s106
    %p108 = scmp.eq.s32.totalorder %s19, 0
    %p109 = por %p107, %p108
    %s111 = sadd.s32 %s110, 1
    %p114 = scmp.eq.s32.totalorder %s13, 1
    %p115 = scmp.ne.s32.totalorder %s110, %s112
    %p116 = scmp.eq.s32.totalorder %s13, 0
    %p117 = por %p115, %p116
    %p118 = scmp.ne.s32.totalorder %s110, %s112
    %p119 = scmp.eq.s32.totalorder %s18, 1
    %p120 = por %p118, %p119
    %p121 = scmp.ne.s32.totalorder %s112, %s113
    %p122 = scmp.eq.s32.totalorder %s18, 0
    %p123 = por %p121, %p122
    %p124 = scmp.ne.s32.totalorder %s112, %s113
    %p125 = scmp.eq.s32.totalorder %s19, 1
    %p126 = por %p124, %p125
    %p128 = scmp.ne.s32.totalorder %s113, %s127
    %p129 = scmp.eq.s32.totalorder %s19, 0
    %p130 = por %p128, %p129
    %s132 = sadd.s32 %s131, 1
    %p135 = scmp.eq.s32.totalorder %s13, 1
    %p136 = scmp.ne.s32.totalorder %s131, %s133
    %p137 = scmp.eq.s32.totalorder %s13, 0
    %p138 = por %p136, %p137
    %p139 = scmp.ne.s32.totalorder %s131, %s133
    %p140 = scmp.eq.s32.totalorder %s18, 1
    %p141 = por %p139, %p140
    %p142 = scmp.ne.s32.totalorder %s133, %s134
    %p143 = scmp.eq.s32.totalorder %s18, 0
    %p144 = por %p142, %p143
    %p145 = scmp.ne.s32.totalorder %s133, %s134
    %p146 = scmp.eq.s32.totalorder %s19, 1
    %p147 = por %p145, %p146
    %p149 = scmp.ne.s32.totalorder %s134, %s148
    %p150 = scmp.eq.s32.totalorder %s19, 0
    %p151 = por %p149, %p150
    %s153 = sadd.s32 %s152, 1
    %p156 = scmp.eq.s32.totalorder %s13, 1
    %p157 = scmp.ne.s32.totalorder %s152, %s154
    %p158 = scmp.eq.s32.totalorder %s13, 0
    %p159 = por %p157, %p158
    %p160 = scmp.ne.s32.totalorder %s152, %s154
    %p161 = scmp.eq.s32.totalorder %s18, 1
    %p162 = por %p160, %p161
    %p163 = scmp.ne.s32.totalorder %s154, %s155
    %p164 = scmp.eq.s32.totalorder %s18, 0
    %p165 = por %p163, %p164
    %p166 = scmp.ne.s32.totalorder %s154, %s155
    %p167 = scmp.eq.s32.totalorder %s19, 1
    %p168 = por %p166, %p167
    %p170 = scmp.ne.s32.totalorder %s155, %s169
    %p171 = scmp.eq.s32.totalorder %s19, 0
    %p172 = por %p170, %p171
    %s173 = ssub.s32 %s13, %s20
    %p174 = scmp.eq.s32.totalorder %s173, 0
    %s176 = sadd.s32 %s175, 1
    %s177 = scalar_select %p174, %s175, %s176
    %p180 = pneg %p174
    %p181 = scmp.eq.s32.totalorder %s13, 1
    %p182 = por %p180, %p181
    %p183 = scmp.ne.s32.totalorder %s175, %s178
    %p184 = scmp.eq.s32.totalorder %s13, 0
    %p185 = por %p183, %p184
    %p186 = scmp.ne.s32.totalorder %s175, %s178
    %p187 = scmp.eq.s32.totalorder %s18, 1
    %p188 = por %p186, %p187
    %p189 = scmp.ne.s32.totalorder %s178, %s179
    %p190 = scmp.eq.s32.totalorder %s18, 0
    %p191 = por %p189, %p190
    %p192 = scmp.ne.s32.totalorder %s178, %s179
    %p193 = scmp.eq.s32.totalorder %s19, 1
    %p194 = por %p192, %p193
    %p196 = scmp.ne.s32.totalorder %s179, %s195
    %p197 = scmp.eq.s32.totalorder %s19, 0
    %p198 = por %p196, %p197
    %p199 = scmp.le.s32.totalorder 1, %s13
    %p200 = scmp.lt.s32.totalorder %s13, 3
    %p201 = pnand %p199, %p200
    %p202 = pneg %p201
    // Predicated region
    $region9: #{tpu_custom_call.1} parent=5 // pred_check
      _
    $region10: #{tpu_custom_call.1} parent=5 // pred_check_branch
      %204 = sbr.rel (%p201) target = $region12
    $region11: #{tpu_custom_call.1} parent=5 // pred_region
      %s205 = ssub.s32 %s13, 1
      // Predicated region
      $region13: #{tpu_custom_call.1} parent=11 // pred_check
        %p206 = pneg %p60
      $region14: #{tpu_custom_call.1} parent=11 // pred_check_branch
        %208 = sbr.rel (%p206) target = $region16
      $region15: #{tpu_custom_call.1} parent=11 // pred_region
        _
      $region16: #{tpu_custom_call.1} parent=11 // pred_fallthru
        _
      // Predicated region
      $region17: #{tpu_custom_call.1} parent=11 // pred_check
        %p209 = pneg %p81
      $region18: #{tpu_custom_call.1} parent=11 // pred_check_branch
        %211 = sbr.rel (%p209) target = $region20
      $region19: #{tpu_custom_call.1} parent=11 // pred_region
        _
      $region20: #{tpu_custom_call.1} parent=11 // pred_fallthru
        _
      // Predicated region
      $region21: #{tpu_custom_call.1} parent=11 // pred_check
        %p212 = pneg %p102
      $region22: #{tpu_custom_call.1} parent=11 // pred_check_branch
        %214 = sbr.rel (%p212) target = $region24
      $region23: #{tpu_custom_call.1} parent=11 // pred_region
        _
      $region24: #{tpu_custom_call.1} parent=11 // pred_fallthru
        _
      // Predicated region
      $region25: #{tpu_custom_call.1} parent=11 // pred_check
        %p215 = pneg %p123
      $region26: #{tpu_custom_call.1} parent=11 // pred_check_branch
        %217 = sbr.rel (%p215) target = $region28
      $region27: #{tpu_custom_call.1} parent=11 // pred_region
        _
      $region28: #{tpu_custom_call.1} parent=11 // pred_fallthru
        _
      // Predicated region
      $region29: #{tpu_custom_call.1} parent=11 // pred_check
        %p218 = pneg %p144
      $region30: #{tpu_custom_call.1} parent=11 // pred_check_branch
        %220 = sbr.rel (%p218) target = $region32
      $region31: #{tpu_custom_call.1} parent=11 // pred_region
        _
      $region32: #{tpu_custom_call.1} parent=11 // pred_fallthru
        _
      // Predicated region
      $region33: #{tpu_custom_call.1} parent=11 // pred_check
        %p221 = pneg %p165
      $region34: #{tpu_custom_call.1} parent=11 // pred_check_branch
        %223 = sbr.rel (%p221) target = $region36
      $region35: #{tpu_custom_call.1} parent=11 // pred_region
        _
      $region36: #{tpu_custom_call.1} parent=11 // pred_fallthru
        _
    $region12: #{tpu_custom_call.1} parent=5 // pred_fallthru
      _
    %p224 = scmp.lt.s32.totalorder %s13, 2
    // Predicated region
    $region37: #{tpu_custom_call.1} parent=5 // pred_check
      %p225 = pneg %p224
    $region38: #{tpu_custom_call.1} parent=5 // pred_check_branch
      %227 = sbr.rel (%p225) target = $region40
    $region39: #{tpu_custom_call.1} parent=5 // pred_region
      // Predicated region
      $region41: #{tpu_custom_call.1} parent=39 // pred_check
        %p228 = pneg %p33
      $region42: #{tpu_custom_call.1} parent=39 // pred_check_branch
        %230 = sbr.rel (%p228) target = $region44
      $region43: #{tpu_custom_call.1} parent=39 // pred_region
        %s231 = smul.u32 8, %s13
        %p232 = scmp.lt.s32.totalorder %s231, 15
        %s233 = scalar_select %p232, %s231, 15
        %s234 = smul.addr %s233, 8
        %s235 = scalar_lea.vmem %s0, %s234
        %s236 = smul.u32 8, %s13
      $region44: #{tpu_custom_call.1} parent=39 // pred_fallthru
        _
    $region40: #{tpu_custom_call.1} parent=5 // pred_fallthru
      _
    %p237 = scmp.le.s32.totalorder 1, %s13
    %p238 = scmp.lt.s32.totalorder %s13, 3
    %p239 = pnand %p237, %p238
    %p240 = pneg %p239
    // Predicated region
    $region45: #{tpu_custom_call.1} parent=5 // pred_check
      _
    $region46: #{tpu_custom_call.1} parent=5 // pred_check_branch
      %242 = sbr.rel (%p239) target = $region48
    $region47: #{tpu_custom_call.1} parent=5 // pred_region
      %s243 = ssub.s32 %s13, 1
      %s244 = smul.u32 8, %s18
      %p245 = scmp.lt.s32.totalorder %s244, 15
      %s246 = scalar_select %p245, %s244, 15
      %s247 = smul.addr %s246, 8
      %s248 = scalar_lea.vmem %s0, %s247
      %p249 = pneg %p39
      %p250 = pneg %p36
      %p251 = pneg %p60
      %p252 = pneg %p57
      %p253 = pneg %p81
      %p254 = pneg %p78
      %p255 = pneg %p102
      %p256 = pneg %p99
      %p257 = pneg %p123
      %p258 = pneg %p120
      %p259 = pneg %p144
      %p260 = pneg %p141
      %p261 = pneg %p165
      %p262 = pneg %p162
      %p263 = pneg %p191
      %p264 = pneg %p188
      %s265 = smul.u32 8, %s18
      %p266 = scmp.lt.s32.totalorder %s265, 15
      %s267 = scalar_select %p266, %s265, 15
      %s268 = smul.addr %s267, 8
      %s269 = scalar_lea.vmem %s7, %s268
      %s270 = smul.u32 8, %s18
      %p271 = scmp.lt.s32.totalorder %s270, 15
      %s272 = scalar_select %p271, %s270, 15
      %s273 = smul.addr %s272, 8
      %s274 = scalar_lea.vmem %s0, %s273
      %s275 = smul.u32 8, %s18
      %s276 = smul.u32 8, %s18
      %p277 = scmp.lt.s32.totalorder %s276, 15
      %s278 = scalar_select %p277, %s276, 15
      %s279 = smul.addr %s278, 8
      %s280 = scalar_lea.vmem %s7, %s279
      %s281 = smul.u32 8, %s18
      %v283 = vld [vmem:[%s274] sm:$0xff]
      %v284 = vld [vmem:[%s274 + $0x8] sm:$0xff]
      %v285 = vld [vmem:[%s274 + $0x10] sm:$0xff]
      %v286 = vld [vmem:[%s274 + $0x18] sm:$0xff]
      %v287 = vld [vmem:[%s274 + $0x20] sm:$0xff]
      %v288 = vld [vmem:[%s274 + $0x28] sm:$0xff]
      %v289 = vld [vmem:[%s274 + $0x30] sm:$0xff]
      %v290 = vld [vmem:[%s274 + $0x38] sm:$0xff]
      %v291 = vpack.c.bf16 %v284, %v283
      %v292 = vpack.c.bf16 %v286, %v285
      %v293 = vpack.c.bf16 %v288, %v287
      %v294 = vpack.c.bf16 %v290, %v289
      %v295 = vld [vmem:[%s1] sm:$0xff]
      %v296 = vld [vmem:[%s1 + $0x8] sm:$0xff]
      %v297 = vld [vmem:[%s2] sm:$0x3]
      %v299 = vlaneseq
      %v300 = vshrl.u32 %v299, 7
      %v301 = vsub.s32 0, %v300
      %v302 = vrot.slane %v297, %v301
      %v303 = vlaneseq
      %v304 = vshrl.u32 %v303, 7
      %v305 = vsub.s32 1, %v304
      %v306 = vrot.slane %v297, %v305
      %v311 = vunpack.c.l.b16 %v295
      %v312 = vunpack.c.h.b16 %v295
      %v313 = vunpack.c.l.b16 %v296
      %v314 = vunpack.c.h.b16 %v296
      %v315 = vpack.c.b16 %v313, %v311
      %v316 = vpack.c.b16 %v314, %v312
      %vm319 = vcmask 130048
      %v321 = vsel %vm319, %v291, 0
      %v324 = vsel %vm319, %v292, 0
      %v327 = vsel %vm319, %v293, 0
      %v330 = vsel %vm319, %v294, 0
      %332 = vmatprep.subr.bf16.mxu0 %v316
      %333 = vmatpush1.bf16.msra.mxu0 %v315
      %334 = vmatprep.subr.bf16.mxu0 0
      %335 = vmatpush1.bf16.msra.mxu0 0
      %336 = vmatprep.subr.bf16.mxu0 0
      %337 = vmatpush1.bf16.msra.mxu0 0
      %338 = vmatprep.subr.bf16.mxu0 0
      %339 = vmatpush1.bf16.msra.mxu0 0
      %340 = vmatprep.subr.bf16.mxu0 0
      %341 = vmatpush1.bf16.msra.mxu0 0
      %342 = vmatprep.subr.bf16.mxu0 0
      %343 = vmatpush1.bf16.msra.mxu0 0
      %344 = vmatprep.subr.bf16.mxu0 0
      %345 = vmatpush1.bf16.msra.mxu0 0
      %346 = vmatprep.subr.bf16.mxu0 0
      %347 = vmatpush1.bf16.msra.mxu0 0
      %348 = vmatprep.subr.bf16.mxu0 0
      %349 = vmatpush1.bf16.msra.mxu0 0
      %350 = vmatprep.subr.bf16.mxu0 0
      %351 = vmatpush1.bf16.msra.mxu0 0
      %352 = vmatprep.subr.bf16.mxu0 0
      %353 = vmatpush1.bf16.msra.mxu0 0
      %354 = vmatprep.subr.bf16.mxu0 0
      %355 = vmatpush1.bf16.msra.mxu0 0
      %356 = vmatprep.subr.bf16.mxu0 0
      %357 = vmatpush1.bf16.msra.mxu0 0
      %358 = vmatprep.subr.bf16.mxu0 0
      %359 = vmatpush1.bf16.msra.mxu0 0
      %360 = vmatprep.subr.bf16.mxu0 0
      %361 = vmatpush1.bf16.msra.mxu0 0
      %362 = vmatprep.subr.bf16.mxu0 0
      %363 = vmatpush1.bf16.msra.mxu0 0
      %364 = vmatprep.mubr.bf16.mxu0 0
      %365 = vmatmul.mubr.bf16.gmra.mrb[0].mxu0 %v321
      %v366 = vpop.f32.mrb[0].mxu0
      %v367 = vadd.f32 %v302, %v366
      %v368 = vpop.f32.mrb[0].mxu0
      %v369 = vadd.f32 %v306, %v368
      %v370 = vpop.f32.mrb[0].mxu0
      %v371 = vadd.f32 %v302, %v370
      %v372 = vpop.f32.mrb[0].mxu0
      %v373 = vadd.f32 %v306, %v372
      %374 = vmatprep.mubr.bf16.mxu0 0
      %375 = vmatmul.mubr.bf16.gmra.mrb[0].mxu0 %v324
      %v376 = vpop.f32.mrb[0].mxu0
      %v377 = vadd.f32 %v302, %v376
      %v378 = vpop.f32.mrb[0].mxu0
      %v379 = vadd.f32 %v306, %v378
      %v380 = vpop.f32.mrb[0].mxu0
      %v381 = vadd.f32 %v302, %v380
      %v382 = vpop.f32.mrb[0].mxu0
      %v383 = vadd.f32 %v306, %v382
      %384 = vmatprep.mubr.bf16.mxu0 0
      %385 = vmatmul.mubr.bf16.gmra.mrb[0].mxu0 %v327
      %v386 = vpop.f32.mrb[0].mxu0
      %v387 = vadd.f32 %v302, %v386
      %v388 = vpop.f32.mrb[0].mxu0
      %v389 = vadd.f32 %v306, %v388
      %v390 = vpop.f32.mrb[0].mxu0
      %v391 = vadd.f32 %v302, %v390
      %v392 = vpop.f32.mrb[0].mxu0
      %v393 = vadd.f32 %v306, %v392
      %394 = vmatprep.mubr.bf16.mxu0 0
      %395 = vmatmul.mubr.bf16.gmra.mrb[0].mxu0 %v330
      %v396 = vpop.f32.mrb[0].mxu0
      %v397 = vadd.f32 %v302, %v396
      %v398 = vpop.f32.mrb[0].mxu0
      %v399 = vadd.f32 %v306, %v398
      %v400 = vpop.f32.mrb[0].mxu0
      %v401 = vadd.f32 %v302, %v400
      %v402 = vpop.f32.mrb[0].mxu0
      %v403 = vadd.f32 %v306, %v402
      %404 = vdwg.mxu0
      %v405 = vmax.f32 %v367, 0.0
      %v406 = vmax.f32 %v369, 0.0
      %v407 = vmax.f32 %v371, 0.0
      %v408 = vmax.f32 %v373, 0.0
      %v409 = vmax.f32 %v377, 0.0
      %v410 = vmax.f32 %v379, 0.0
      %v411 = vmax.f32 %v381, 0.0
      %v412 = vmax.f32 %v383, 0.0
      %v413 = vmax.f32 %v387, 0.0
      %v414 = vmax.f32 %v389, 0.0
      %v415 = vmax.f32 %v391, 0.0
      %v416 = vmax.f32 %v393, 0.0
      %v417 = vmax.f32 %v397, 0.0
      %v418 = vmax.f32 %v399, 0.0
      %v419 = vmax.f32 %v401, 0.0
      %v420 = vmax.f32 %v403, 0.0
      %v421 = vpack.c.bf16 %v407, %v405
      %v422 = vpack.c.bf16 %v408, %v406
      %v423 = vpack.c.bf16 %v411, %v409
      %v424 = vpack.c.bf16 %v412, %v410
      %v425 = vpack.c.bf16 %v415, %v413
      %v426 = vpack.c.bf16 %v416, %v414
      %v427 = vpack.c.bf16 %v419, %v417
      %v428 = vpack.c.bf16 %v420, %v418
      %v429 = vld [vmem:[%s3] sm:$0xff]
      %v430 = vld [vmem:[%s3 + $0x8] sm:$0xff]
      %v431 = vld [vmem:[%s3 + $0x10] sm:$0xff]
      %v432 = vld [vmem:[%s3 + $0x18] sm:$0xff]
      %v433 = vld [vmem:[%s3 + $0x20] sm:$0xff]
      %v434 = vld [vmem:[%s3 + $0x28] sm:$0xff]
      %v435 = vld [vmem:[%s3 + $0x30] sm:$0xff]
      %v436 = vld [vmem:[%s3 + $0x38] sm:$0xff]
      %v437 = vld [vmem:[%s3 + $0x40] sm:$0xff]
      %v438 = vld [vmem:[%s3 + $0x48] sm:$0xff]
      %v439 = vld [vmem:[%s3 + $0x50] sm:$0xff]
      %v440 = vld [vmem:[%s3 + $0x58] sm:$0xff]
      %v441 = vld [vmem:[%s3 + $0x60] sm:$0xff]
      %v442 = vld [vmem:[%s3 + $0x68] sm:$0xff]
      %v443 = vld [vmem:[%s3 + $0x70] sm:$0xff]
      %v444 = vld [vmem:[%s3 + $0x78] sm:$0xff]
      %v445 = vld [vmem:[%s3 + $0x80] sm:$0xff]
      %v446 = vld [vmem:[%s3 + $0x88] sm:$0xff]
      %v447 = vld [vmem:[%s3 + $0x90] sm:$0xff]
      %v448 = vld [vmem:[%s3 + $0x98] sm:$0xff]
      %v449 = vld [vmem:[%s3 + $0xa0] sm:$0xff]
      %v450 = vld [vmem:[%s3 + $0xa8] sm:$0xff]
      %v451 = vld [vmem:[%s3 + $0xb0] sm:$0xff]
      %v452 = vld [vmem:[%s3 + $0xb8] sm:$0xff]
      %v453 = vld [vmem:[%s3 + $0xc0] sm:$0xff]
      %v454 = vld [vmem:[%s3 + $0xc8] sm:$0xff]
      %v455 = vld [vmem:[%s3 + $0xd0] sm:$0xff]
      %v456 = vld [vmem:[%s3 + $0xd8] sm:$0xff]
      %v457 = vld [vmem:[%s3 + $0xe0] sm:$0xff]
      %v458 = vld [vmem:[%s3 + $0xe8] sm:$0xff]
      %v459 = vld [vmem:[%s3 + $0xf0] sm:$0xff]
      %v460 = vld [vmem:[%s3 + $0xf8] sm:$0xff]
      %v461 = vld [vmem:[%s4] sm:$0x3]
      %v463 = vlaneseq
      %v464 = vshrl.u32 %v463, 7
      %v465 = vsub.s32 0, %v464
      %v466 = vrot.slane %v461, %v465
      %v467 = vlaneseq
      %v468 = vshrl.u32 %v467, 7
      %v469 = vsub.s32 1, %v468
      %v470 = vrot.slane %v461, %v469
      %v505 = vunpack.c.l.b16 %v429
      %v506 = vunpack.c.h.b16 %v429
      %v507 = vunpack.c.l.b16 %v430
      %v508 = vunpack.c.h.b16 %v430
      %v509 = vunpack.c.l.b16 %v431
      %v510 = vunpack.c.h.b16 %v431
      %v511 = vunpack.c.l.b16 %v432
      %v512 = vunpack.c.h.b16 %v432
      %v513 = vunpack.c.l.b16 %v433
      %v514 = vunpack.c.h.b16 %v433
      %v515 = vunpack.c.l.b16 %v434
      %v516 = vunpack.c.h.b16 %v434
      %v517 = vunpack.c.l.b16 %v435
      %v518 = vunpack.c.h.b16 %v435
      %v519 = vunpack.c.l.b16 %v436
      %v520 = vunpack.c.h.b16 %v436
      %v521 = vunpack.c.l.b16 %v437
      %v522 = vunpack.c.h.b16 %v437
      %v523 = vunpack.c.l.b16 %v438
      %v524 = vunpack.c.h.b16 %v438
      %v525 = vunpack.c.l.b16 %v439
      %v526 = vunpack.c.h.b16 %v439
      %v527 = vunpack.c.l.b16 %v440
      %v528 = vunpack.c.h.b16 %v440
      %v529 = vunpack.c.l.b16 %v441
      %v530 = vunpack.c.h.b16 %v441
      %v531 = vunpack.c.l.b16 %v442
      %v532 = vunpack.c.h.b16 %v442
      %v533 = vunpack.c.l.b16 %v443
      %v534 = vunpack.c.h.b16 %v443
      %v535 = vunpack.c.l.b16 %v444
      %v536 = vunpack.c.h.b16 %v444
      %v537 = vunpack.c.l.b16 %v445
      %v538 = vunpack.c.h.b16 %v445
      %v539 = vunpack.c.l.b16 %v446
      %v540 = vunpack.c.h.b16 %v446
      %v541 = vunpack.c.l.b16 %v447
      %v542 = vunpack.c.h.b16 %v447
      %v543 = vunpack.c.l.b16 %v448
      %v544 = vunpack.c.h.b16 %v448
      %v545 = vunpack.c.l.b16 %v449
      %v546 = vunpack.c.h.b16 %v449
      %v547 = vunpack.c.l.b16 %v450
      %v548 = vunpack.c.h.b16 %v450
      %v549 = vunpack.c.l.b16 %v451
      %v550 = vunpack.c.h.b16 %v451
      %v551 = vunpack.c.l.b16 %v452
      %v552 = vunpack.c.h.b16 %v452
      %v553 = vunpack.c.l.b16 %v453
      %v554 = vunpack.c.h.b16 %v453
      %v555 = vunpack.c.l.b16 %v454
      %v556 = vunpack.c.h.b16 %v454
      %v557 = vunpack.c.l.b16 %v455
      %v558 = vunpack.c.h.b16 %v455
      %v559 = vunpack.c.l.b16 %v456
      %v560 = vunpack.c.h.b16 %v456
      %v561 = vunpack.c.l.b16 %v457
      %v562 = vunpack.c.h.b16 %v457
      %v563 = vunpack.c.l.b16 %v458
      %v564 = vunpack.c.h.b16 %v458
      %v565 = vunpack.c.l.b16 %v459
      %v566 = vunpack.c.h.b16 %v459
      %v567 = vunpack.c.l.b16 %v460
      %v568 = vunpack.c.h.b16 %v460
      %v569 = vpack.c.b16 %v507, %v505
      %v570 = vpack.c.b16 %v508, %v506
      %v571 = vpack.c.b16 %v511, %v509
      %v572 = vpack.c.b16 %v512, %v510
      %v573 = vpack.c.b16 %v515, %v513
      %v574 = vpack.c.b16 %v516, %v514
      %v575 = vpack.c.b16 %v519, %v517
      %v576 = vpack.c.b16 %v520, %v518
      %v577 = vpack.c.b16 %v523, %v521
      %v578 = vpack.c.b16 %v524, %v522
      %v579 = vpack.c.b16 %v527, %v525
      %v580 = vpack.c.b16 %v528, %v526
      %v581 = vpack.c.b16 %v531, %v529
      %v582 = vpack.c.b16 %v532, %v530
      %v583 = vpack.c.b16 %v535, %v533
      %v584 = vpack.c.b16 %v536, %v534
      %v585 = vpack.c.b16 %v539, %v537
      %v586 = vpack.c.b16 %v540, %v538
      %v587 = vpack.c.b16 %v543, %v541
      %v588 = vpack.c.b16 %v544, %v542
      %v589 = vpack.c.b16 %v547, %v545
      %v590 = vpack.c.b16 %v548, %v546
      %v591 = vpack.c.b16 %v551, %v549
      %v592 = vpack.c.b16 %v552, %v550
      %v593 = vpack.c.b16 %v555, %v553
      %v594 = vpack.c.b16 %v556, %v554
      %v595 = vpack.c.b16 %v559, %v557
      %v596 = vpack.c.b16 %v560, %v558
      %v597 = vpack.c.b16 %v563, %v561
      %v598 = vpack.c.b16 %v564, %v562
      %v599 = vpack.c.b16 %v567, %v565
      %v600 = vpack.c.b16 %v568, %v566
      %633 = vmatprep.subr.bf16.mxu0 %v570
      %634 = vmatpush1.bf16.msra.mxu0 %v569
      %635 = vmatprep.subr.bf16.mxu0 %v572
      %636 = vmatpush1.bf16.msra.mxu0 %v571
      %637 = vmatprep.subr.bf16.mxu0 %v574
      %638 = vmatpush1.bf16.msra.mxu0 %v573
      %639 = vmatprep.subr.bf16.mxu0 %v576
      %640 = vmatpush1.bf16.msra.mxu0 %v575
      %641 = vmatprep.subr.bf16.mxu0 %v578
      %642 = vmatpush1.bf16.msra.mxu0 %v577
      %643 = vmatprep.subr.bf16.mxu0 %v580
      %644 = vmatpush1.bf16.msra.mxu0 %v579
      %645 = vmatprep.subr.bf16.mxu0 %v582
      %646 = vmatpush1.bf16.msra.mxu0 %v581
      %647 = vmatprep.subr.bf16.mxu0 %v584
      %648 = vmatpush1.bf16.msra.mxu0 %v583
      %649 = vmatprep.subr.bf16.mxu0 %v586
      %650 = vmatpush1.bf16.msra.mxu0 %v585
      %651 = vmatprep.subr.bf16.mxu0 %v588
      %652 = vmatpush1.bf16.msra.mxu0 %v587
      %653 = vmatprep.subr.bf16.mxu0 %v590
      %654 = vmatpush1.bf16.msra.mxu0 %v589
      %655 = vmatprep.subr.bf16.mxu0 %v592
      %656 = vmatpush1.bf16.msra.mxu0 %v591
      %657 = vmatprep.subr.bf16.mxu0 %v594
      %658 = vmatpush1.bf16.msra.mxu0 %v593
      %659 = vmatprep.subr.bf16.mxu0 %v596
      %660 = vmatpush1.bf16.msra.mxu0 %v595
      %661 = vmatprep.subr.bf16.mxu0 %v598
      %662 = vmatpush1.bf16.msra.mxu0 %v597
      %663 = vmatprep.subr.bf16.mxu0 %v600
      %664 = vmatpush1.bf16.msra.mxu0 %v599
      %665 = vmatprep.mubr.bf16.mxu0 %v422
      %666 = vmatmul.mubr.bf16.gmra.mrb[0].mxu0 %v421
      %v667 = vpop.f32.mrb[0].mxu0
      %v668 = vadd.f32 %v466, %v667
      %v669 = vpop.f32.mrb[0].mxu0
      %v670 = vadd.f32 %v470, %v669
      %v671 = vpop.f32.mrb[0].mxu0
      %v672 = vadd.f32 %v466, %v671
      %v673 = vpop.f32.mrb[0].mxu0
      %v674 = vadd.f32 %v470, %v673
      %675 = vmatprep.mubr.bf16.mxu0 %v424
      %676 = vmatmul.mubr.bf16.gmra.mrb[0].mxu0 %v423
      %v677 = vpop.f32.mrb[0].mxu0
      %v678 = vadd.f32 %v466, %v677
      %v679 = vpop.f32.mrb[0].mxu0
      %v680 = vadd.f32 %v470, %v679
      %v681 = vpop.f32.mrb[0].mxu0
      %v682 = vadd.f32 %v466, %v681
      %v683 = vpop.f32.mrb[0].mxu0
      %v684 = vadd.f32 %v470, %v683
      %685 = vmatprep.mubr.bf16.mxu0 %v426
      %686 = vmatmul.mubr.bf16.gmra.mrb[0].mxu0 %v425
      %v687 = vpop.f32.mrb[0].mxu0
      %v688 = vadd.f32 %v466, %v687
      %v689 = vpop.f32.mrb[0].mxu0
      %v690 = vadd.f32 %v470, %v689
      %v691 = vpop.f32.mrb[0].mxu0
      %v692 = vadd.f32 %v466, %v691
      %v693 = vpop.f32.mrb[0].mxu0
      %v694 = vadd.f32 %v470, %v693
      %695 = vmatprep.mubr.bf16.mxu0 %v428
      %696 = vmatmul.mubr.bf16.gmra.mrb[0].mxu0 %v427
      %v697 = vpop.f32.mrb[0].mxu0
      %v698 = vadd.f32 %v466, %v697
      %v699 = vpop.f32.mrb[0].mxu0
      %v700 = vadd.f32 %v470, %v699
      %v701 = vpop.f32.mrb[0].mxu0
      %v702 = vadd.f32 %v466, %v701
      %v703 = vpop.f32.mrb[0].mxu0
      %v704 = vadd.f32 %v470, %v703
      %705 = vdwg.mxu0
      %v706 = vmax.f32 %v668, 0.0
      %v707 = vmax.f32 %v670, 0.0
      %v708 = vmax.f32 %v672, 0.0
      %v709 = vmax.f32 %v674, 0.0
      %v710 = vmax.f32 %v678, 0.0
      %v711 = vmax.f32 %v680, 0.0
      %v712 = vmax.f32 %v682, 0.0
      %v713 = vmax.f32 %v684, 0.0
      %v714 = vmax.f32 %v688, 0.0
      %v715 = vmax.f32 %v690, 0.0
      %v716 = vmax.f32 %v692, 0.0
      %v717 = vmax.f32 %v694, 0.0
      %v718 = vmax.f32 %v698, 0.0
      %v719 = vmax.f32 %v700, 0.0
      %v720 = vmax.f32 %v702, 0.0
      %v721 = vmax.f32 %v704, 0.0
      %v722 = vpack.c.bf16 %v708, %v706
      %v723 = vpack.c.bf16 %v709, %v707
      %v724 = vpack.c.bf16 %v712, %v710
      %v725 = vpack.c.bf16 %v713, %v711
      %v726 = vpack.c.bf16 %v716, %v714
      %v727 = vpack.c.bf16 %v717, %v715
      %v728 = vpack.c.bf16 %v720, %v718
      %v729 = vpack.c.bf16 %v721, %v719
      %v730 = vld [vmem:[%s5] sm:$0xf]
      %v731 = vld [vmem:[%s5 + $0x4] sm:$0xf]
      %v732 = vld [vmem:[%s5 + $0x8] sm:$0xf]
      %v733 = vld [vmem:[%s5 + $0xc] sm:$0xf]
      %v734 = vld [vmem:[%s5 + $0x10] sm:$0xf]
      %v735 = vld [vmem:[%s5 + $0x14] sm:$0xf]
      %v736 = vld [vmem:[%s5 + $0x18] sm:$0xf]
      %v737 = vld [vmem:[%s5 + $0x1c] sm:$0xf]
      %v738 = vld [vmem:[%s5 + $0x20] sm:$0xf]
      %v739 = vld [vmem:[%s5 + $0x24] sm:$0xf]
      %v740 = vld [vmem:[%s5 + $0x28] sm:$0xf]
      %v741 = vld [vmem:[%s5 + $0x2c] sm:$0xf]
      %v742 = vld [vmem:[%s5 + $0x30] sm:$0xf]
      %v743 = vld [vmem:[%s5 + $0x34] sm:$0xf]
      %v744 = vld [vmem:[%s5 + $0x38] sm:$0xf]
      %v745 = vld [vmem:[%s5 + $0x3c] sm:$0xf]
      %v746 = vld [vmem:[%s5 + $0x40] sm:$0xf]
      %v747 = vld [vmem:[%s5 + $0x44] sm:$0xf]
      %v748 = vld [vmem:[%s5 + $0x48] sm:$0xf]
      %v749 = vld [vmem:[%s5 + $0x4c] sm:$0xf]
      %v750 = vld [vmem:[%s5 + $0x50] sm:$0xf]
      %v751 = vld [vmem:[%s5 + $0x54] sm:$0xf]
      %v752 = vld [vmem:[%s5 + $0x58] sm:$0xf]
      %v753 = vld [vmem:[%s5 + $0x5c] sm:$0xf]
      %v754 = vld [vmem:[%s5 + $0x60] sm:$0xf]
      %v755 = vld [vmem:[%s5 + $0x64] sm:$0xf]
      %v756 = vld [vmem:[%s5 + $0x68] sm:$0xf]
      %v757 = vld [vmem:[%s5 + $0x6c] sm:$0xf]
      %v758 = vld [vmem:[%s5 + $0x70] sm:$0xf]
      %v759 = vld [vmem:[%s5 + $0x74] sm:$0xf]
      %v760 = vld [vmem:[%s5 + $0x78] sm:$0xf]
      %v761 = vld [vmem:[%s5 + $0x7c] sm:$0xf]
      %v762 = vld [vmem:[%s6] sm:$0x1]
      %v764 = vlaneseq
      %v765 = vshrl.u32 %v764, 7
      %v766 = vsub.s32 0, %v765
      %v767 = vrot.slane %v762, %v766
      %v801 = vunpack.c.l.b16 %v730
      %v802 = vunpack.c.l.b16 %v731
      %v803 = vunpack.c.l.b16 %v732
      %v804 = vunpack.c.l.b16 %v733
      %v805 = vunpack.c.l.b16 %v734
      %v806 = vunpack.c.l.b16 %v735
      %v807 = vunpack.c.l.b16 %v736
      %v808 = vunpack.c.l.b16 %v737
      %v809 = vunpack.c.l.b16 %v738
      %v810 = vunpack.c.l.b16 %v739
      %v811 = vunpack.c.l.b16 %v740
      %v812 = vunpack.c.l.b16 %v741
      %v813 = vunpack.c.l.b16 %v742
      %v814 = vunpack.c.l.b16 %v743
      %v815 = vunpack.c.l.b16 %v744
      %v816 = vunpack.c.l.b16 %v745
      %v817 = vunpack.c.l.b16 %v746
      %v818 = vunpack.c.l.b16 %v747
      %v819 = vunpack.c.l.b16 %v748
      %v820 = vunpack.c.l.b16 %v749
      %v821 = vunpack.c.l.b16 %v750
      %v822 = vunpack.c.l.b16 %v751
      %v823 = vunpack.c.l.b16 %v752
      %v824 = vunpack.c.l.b16 %v753
      %v825 = vunpack.c.l.b16 %v754
      %v826 = vunpack.c.l.b16 %v755
      %v827 = vunpack.c.l.b16 %v756
      %v828 = vunpack.c.l.b16 %v757
      %v829 = vunpack.c.l.b16 %v758
      %v830 = vunpack.c.l.b16 %v759
      %v831 = vunpack.c.l.b16 %v760
      %v832 = vunpack.c.l.b16 %v761
      %v833 = vpack.c.b16 %v802, %v801
      %v834 = vpack.c.b16 %v804, %v803
      %v835 = vpack.c.b16 %v806, %v805
      %v836 = vpack.c.b16 %v808, %v807
      %v837 = vpack.c.b16 %v810, %v809
      %v838 = vpack.c.b16 %v812, %v811
      %v839 = vpack.c.b16 %v814, %v813
      %v840 = vpack.c.b16 %v816, %v815
      %v841 = vpack.c.b16 %v818, %v817
      %v842 = vpack.c.b16 %v820, %v819
      %v843 = vpack.c.b16 %v822, %v821
      %v844 = vpack.c.b16 %v824, %v823
      %v845 = vpack.c.b16 %v826, %v825
      %v846 = vpack.c.b16 %v828, %v827
      %v847 = vpack.c.b16 %v830, %v829
      %v848 = vpack.c.b16 %v832, %v831
      %865 = vmatprep.subr.bf16.mxu0 0
      %866 = vmatpush1.bf16.msra.mxu0 %v833
      %867 = vmatprep.subr.bf16.mxu0 0
      %868 = vmatpush1.bf16.msra.mxu0 %v834
      %869 = vmatprep.subr.bf16.mxu0 0
      %870 = vmatpush1.bf16.msra.mxu0 %v835
      %871 = vmatprep.subr.bf16.mxu0 0
      %872 = vmatpush1.bf16.msra.mxu0 %v836
      %873 = vmatprep.subr.bf16.mxu0 0
      %874 = vmatpush1.bf16.msra.mxu0 %v837
      %875 = vmatprep.subr.bf16.mxu0 0
      %876 = vmatpush1.bf16.msra.mxu0 %v838
      %877 = vmatprep.subr.bf16.mxu0 0
      %878 = vmatpush1.bf16.msra.mxu0 %v839
      %879 = vmatprep.subr.bf16.mxu0 0
      %880 = vmatpush1.bf16.msra.mxu0 %v840
      %881 = vmatprep.subr.bf16.mxu0 0
      %882 = vmatpush1.bf16.msra.mxu0 %v841
      %883 = vmatprep.subr.bf16.mxu0 0
      %884 = vmatpush1.bf16.msra.mxu0 %v842
      %885 = vmatprep.subr.bf16.mxu0 0
      %886 = vmatpush1.bf16.msra.mxu0 %v843
      %887 = vmatprep.subr.bf16.mxu0 0
      %888 = vmatpush1.bf16.msra.mxu0 %v844
      %889 = vmatprep.subr.bf16.mxu0 0
      %890 = vmatpush1.bf16.msra.mxu0 %v845
      %891 = vmatprep.subr.bf16.mxu0 0
      %892 = vmatpush1.bf16.msra.mxu0 %v846
      %893 = vmatprep.subr.bf16.mxu0 0
      %894 = vmatpush1.bf16.msra.mxu0 %v847
      %895 = vmatprep.subr.bf16.mxu0 0
      %896 = vmatpush1.bf16.msra.mxu0 %v848
      %897 = vmatprep.mubr.bf16.mxu0 %v723
      %898 = vmatmul.mubr.bf16.gmra.mrb[0].mxu0 %v722
      %v899 = vpop.f32.mrb[0].mxu0
      %v900 = vadd.f32 %v767, %v899
      %v901 = vpop.f32.mrb[0].mxu0
      %v902 = vpop.f32.mrb[0].mxu0
      %v903 = vadd.f32 %v767, %v902
      %v904 = vpop.f32.mrb[0].mxu0
      %905 = vmatprep.mubr.bf16.mxu0 %v725
      %906 = vmatmul.mubr.bf16.gmra.mrb[0].mxu0 %v724
      %v907 = vpop.f32.mrb[0].mxu0
      %v908 = vadd.f32 %v767, %v907
      %v909 = vpop.f32.mrb[0].mxu0
      %v910 = vpop.f32.mrb[0].mxu0
      %v911 = vadd.f32 %v767, %v910
      %v912 = vpop.f32.mrb[0].mxu0
      %913 = vmatprep.mubr.bf16.mxu0 %v727
      %914 = vmatmul.mubr.bf16.gmra.mrb[0].mxu0 %v726
      %v915 = vpop.f32.mrb[0].mxu0
      %v916 = vadd.f32 %v767, %v915
      %v917 = vpop.f32.mrb[0].mxu0
      %v918 = vpop.f32.mrb[0].mxu0
      %v919 = vadd.f32 %v767, %v918
      %v920 = vpop.f32.mrb[0].mxu0
      %921 = vmatprep.mubr.bf16.mxu0 %v729
      %922 = vmatmul.mubr.bf16.gmra.mrb[0].mxu0 %v728
      %v923 = vpop.f32.mrb[0].mxu0
      %v924 = vadd.f32 %v767, %v923
      %v925 = vpop.f32.mrb[0].mxu0
      %v926 = vpop.f32.mrb[0].mxu0
      %v927 = vadd.f32 %v767, %v926
      %v928 = vpop.f32.mrb[0].mxu0
      %929 = vdwg.mxu0
      %v930 = vtanh.pop %v900
      %v931 = vtanh.pop %v903
      %v932 = vtanh.pop %v908
      %v933 = vtanh.pop %v911
      %v934 = vtanh.pop %v916
      %v935 = vtanh.pop %v919
      %v936 = vtanh.pop %v924
      %v937 = vtanh.pop %v927
      %v938 = vmul.f32 %v930, 2.0
      %v939 = vmul.f32 %v931, 2.0
      %v940 = vmul.f32 %v932, 2.0
      %v941 = vmul.f32 %v933, 2.0
      %v942 = vmul.f32 %v934, 2.0
      %v943 = vmul.f32 %v935, 2.0
      %v944 = vmul.f32 %v936, 2.0
      %v945 = vmul.f32 %v937, 2.0
      %vm946 = vcmask 31744
      %947 = vst.msk [vmem:[%s280] sm:$0xff] %vm946, %v938
      %948 = vst.msk [vmem:[%s280 + $0x8] sm:$0xff] %vm946, %v939
      %949 = vst.msk [vmem:[%s280 + $0x10] sm:$0xff] %vm946, %v940
      %950 = vst.msk [vmem:[%s280 + $0x18] sm:$0xff] %vm946, %v941
      %951 = vst.msk [vmem:[%s280 + $0x20] sm:$0xff] %vm946, %v942
      %952 = vst.msk [vmem:[%s280 + $0x28] sm:$0xff] %vm946, %v943
      %953 = vst.msk [vmem:[%s280 + $0x30] sm:$0xff] %vm946, %v944
      %954 = vst.msk [vmem:[%s280 + $0x38] sm:$0xff] %vm946, %v945
      %s955 = smul.u32 8, %s18
      %p956 = scmp.lt.s32.totalorder %s955, 15
      %s957 = scalar_select %p956, %s955, 15
      %s958 = smul.addr %s957, 8
      %s959 = scalar_lea.vmem %s7, %s958
      // Predicated region
      $region49: #{tpu_custom_call.1} parent=47 // pred_check
        %p960 = pneg %p188
      $region50: #{tpu_custom_call.1} parent=47 // pred_check_branch
        %962 = sbr.rel (%p960) target = $region52
      $region51: #{tpu_custom_call.1} parent=47 // pred_region
        %s963 = smul.u32 8, %s18
      $region52: #{tpu_custom_call.1} parent=47 // pred_fallthru
        _
    $region48: #{tpu_custom_call.1} parent=5 // pred_fallthru
      _
    %p964 = scmp.le.s32.totalorder 2, %s13
    // Predicated region
    $region53: #{tpu_custom_call.1} parent=5 // pred_check
      %p965 = pneg %p964
    $region54: #{tpu_custom_call.1} parent=5 // pred_check_branch
      %967 = sbr.rel (%p965) target = $region56
    $region55: #{tpu_custom_call.1} parent=5 // pred_region
      %s968 = ssub.s32 %s13, 2
      // Predicated region
      $region57: #{tpu_custom_call.1} parent=55 // pred_check
        %p969 = pneg %p194
      $region58: #{tpu_custom_call.1} parent=55 // pred_check_branch
        %971 = sbr.rel (%p969) target = $region60
      $region59: #{tpu_custom_call.1} parent=55 // pred_region
        %s972 = smul.u32 8, %s19
        %p973 = scmp.lt.s32.totalorder %s972, 15
        %s974 = scalar_select %p973, %s972, 15
        %s975 = smul.addr %s974, 8
        %s976 = scalar_lea.vmem %s7, %s975
      $region60: #{tpu_custom_call.1} parent=55 // pred_fallthru
        _
    $region56: #{tpu_custom_call.1} parent=5 // pred_fallthru
      _
  $region6: #{tpu_custom_call.1} parent=0 // loop_footer
    %s17 = sadd.s32 1, %s13
  $region7: #{tpu_custom_call.1} parent=0 // loop_footer_branch
    %12 = sbr.rel target = $region3
  $region8: #{tpu_custom_call.1} parent=0 // loop_exit
    _

</llo_original>
